<compile_context>
chip_gen: v7x
topology: tpu7x:2x2x1
jax: 0.10.0
libtpu: 0.0.40
codegen_flags: <defaults>
</compile_context>

<pallas_src>
import jax
import jax.numpy as jnp
from jax.experimental import pallas as pl
from jax.experimental.pallas import tpu as pltpu

d_feature = 3
d_model = 256


def _linear_kernel(x_ref, w_ref, b_ref, o_ref):
    # x_ref: (TM, 3); w_ref: (3, 256); b_ref: (1, 256); o_ref: (TM, 256)
    x = x_ref[...].astype(jnp.float32)
    w = w_ref[...].astype(jnp.float32)
    # K=3 -> three broadcast-FMAs on the VPU (avoids a K-padded MXU matmul).
    acc = x[:, 0:1] * w[0:1, :]
    acc = acc + x[:, 1:2] * w[1:2, :]
    acc = acc + x[:, 2:3] * w[2:3, :]
    acc = acc + b_ref[...].astype(jnp.float32)
    o_ref[...] = acc.astype(o_ref.dtype)


def _round_up(x, n):
    return (x + n - 1) // n * n


def position2embedding_pallas(x, weight, bias, *, tm=2048):
    """x: (..., d_feature) float32; weight: (d_model, d_feature) (PyTorch layout);
    bias: (d_model,). Returns (..., d_model)."""
    lead_shape = x.shape[:-1]
    M = 1
    for s in lead_shape:
        M *= s
    x2d = x.reshape(M, d_feature)
    w_t = weight.T.astype(x.dtype)                  # (d_feature, d_model)
    b2d = bias.reshape(1, d_model).astype(x.dtype)  # (1, d_model)

    # Row tile: multiple of 8 sublanes; pad M host-side so the grid divides evenly.
    tm_eff = min(tm, _round_up(max(M, 1), 8))
    m_pad = _round_up(M, tm_eff)
    if m_pad != M:
        x2d = jnp.pad(x2d, ((0, m_pad - M), (0, 0)))

    grid = (m_pad // tm_eff,)
    cost = pl.CostEstimate(
        flops=2 * M * d_feature * d_model,
        transcendentals=0,
        bytes_accessed=M * (d_feature + d_model) * 4
        + d_feature * d_model * 4
        + d_model * 4,
    )

    out = pl.pallas_call(
        _linear_kernel,
        out_shape=jax.ShapeDtypeStruct((m_pad, d_model), x.dtype),
        grid_spec=pl.GridSpec(
            grid=grid,
            in_specs=[
                pl.BlockSpec((tm_eff, d_feature), lambda i: (i, 0)),
                pl.BlockSpec((d_feature, d_model), lambda i: (0, 0)),
                pl.BlockSpec((1, d_model), lambda i: (0, 0)),
            ],
            out_specs=pl.BlockSpec((tm_eff, d_model), lambda i: (i, 0)),
        ),
        compiler_params=pltpu.CompilerParams(
            # M axis is independent work: shard across TensorCores on v7x,
            # neutral on v5e/v6e.
            dimension_semantics=("parallel",),
        ),
        cost_estimate=cost,
    )(x2d, w_t, b2d)

    if m_pad != M:
        out = out[:M]
    return out.reshape(*lead_shape, d_model)


def _init_linear_params(key, in_features, out_features):
    # Deterministic init mirroring nn.Linear's default: U(-1/sqrt(in), 1/sqrt(in))
    kw, kb = jax.random.split(key)
    bound = 1.0 / jnp.sqrt(jnp.float32(in_features))
    weight = jax.random.uniform(
        kw, (out_features, in_features), jnp.float32, -bound, bound)
    bias = jax.random.uniform(
        kb, (out_features,), jnp.float32, -bound, bound)
    return weight, bias


if __name__ == "__main__":
    key = jax.random.PRNGKey(0)
    k_param, k_x = jax.random.split(key)

    weight, bias = _init_linear_params(k_param, d_feature, d_model)

    # Small example: batch=2, seq=8, feature=3 -> embedding (2, 8, 256)
    batch, seq = 2, 8
    position = jax.random.normal(k_x, (batch, seq, d_feature), jnp.float32)

    emb = position2embedding_pallas(position, weight, bias)
    emb = jax.block_until_ready(emb)

    # Reference check against plain JAX (same semantics as PyTorch nn.Linear)
    ref = jnp.einsum("bsf,of->bso", position, weight) + bias
    assert emb.shape == (batch, seq, d_model)
    assert jnp.allclose(emb, ref, atol=1e-5, rtol=1e-5)

    print("KERNEL_OK")
</pallas_src>

<mosaic_0001>
module attributes {stable_mosaic.version = 11 : i64} {
  func.func @_linear_kernel(%arg0: i32, %arg1: memref<16x3xf32, #tpu.memory_space<vmem>>, %arg2: memref<3x256xf32, #tpu.memory_space<vmem>>, %arg3: memref<1x256xf32, #tpu.memory_space<vmem>>, %arg4: memref<16x256xf32, #tpu.memory_space<vmem>>) attributes {dimension_semantics = [#tpu.dimension_semantics<parallel>], iteration_bounds = array<i64: 1>, scalar_prefetch = 0 : i64, scratch_operands = 0 : i64, tpu.core_type = #tpu.core_type<tc>, window_params = [{transform_indices = @transform_0, window_bounds = array<i64: 16, 3>}, {pipeline_mode = #tpu.pipeline_mode<synchronous>, transform_indices = @transform_1, window_bounds = array<i64: 3, 256>}, {pipeline_mode = #tpu.pipeline_mode<synchronous>, transform_indices = @transform_2, window_bounds = array<i64: 1, 256>}, {transform_indices = @transform_3, window_bounds = array<i64: 16, 256>}]} {
    %c0 = arith.constant 0 : index
    %c0_0 = arith.constant 0 : index
    %0 = vector.load %arg1[%c0, %c0_0] : memref<16x3xf32, #tpu.memory_space<vmem>>, vector<16x3xf32>
    %c0_1 = arith.constant 0 : index
    %c0_2 = arith.constant 0 : index
    %1 = vector.load %arg2[%c0_1, %c0_2] : memref<3x256xf32, #tpu.memory_space<vmem>>, vector<3x256xf32>
    %2 = vector.extract_strided_slice %0 {offsets = [0, 0], sizes = [16, 1], strides = [1, 1]} : vector<16x3xf32> to vector<16x1xf32>
    %3 = vector.extract_strided_slice %1 {offsets = [0, 0], sizes = [1, 256], strides = [1, 1]} : vector<3x256xf32> to vector<1x256xf32>
    %4 = vector.broadcast %2 : vector<16x1xf32> to vector<16x256xf32>
    %5 = vector.broadcast %3 : vector<1x256xf32> to vector<16x256xf32>
    %6 = arith.mulf %4, %5 : vector<16x256xf32>
    %7 = vector.extract_strided_slice %0 {offsets = [0, 1], sizes = [16, 1], strides = [1, 1]} : vector<16x3xf32> to vector<16x1xf32>
    %8 = vector.extract_strided_slice %1 {offsets = [1, 0], sizes = [1, 256], strides = [1, 1]} : vector<3x256xf32> to vector<1x256xf32>
    %9 = vector.broadcast %7 : vector<16x1xf32> to vector<16x256xf32>
    %10 = vector.broadcast %8 : vector<1x256xf32> to vector<16x256xf32>
    %11 = arith.mulf %9, %10 : vector<16x256xf32>
    %12 = arith.addf %6, %11 : vector<16x256xf32>
    %13 = vector.extract_strided_slice %0 {offsets = [0, 2], sizes = [16, 1], strides = [1, 1]} : vector<16x3xf32> to vector<16x1xf32>
    %14 = vector.extract_strided_slice %1 {offsets = [2, 0], sizes = [1, 256], strides = [1, 1]} : vector<3x256xf32> to vector<1x256xf32>
    %15 = vector.broadcast %13 : vector<16x1xf32> to vector<16x256xf32>
    %16 = vector.broadcast %14 : vector<1x256xf32> to vector<16x256xf32>
    %17 = arith.mulf %15, %16 : vector<16x256xf32>
    %18 = arith.addf %12, %17 : vector<16x256xf32>
    %c0_3 = arith.constant 0 : index
    %c0_4 = arith.constant 0 : index
    %19 = vector.load %arg3[%c0_3, %c0_4] : memref<1x256xf32, #tpu.memory_space<vmem>>, vector<1x256xf32>
    %20 = vector.broadcast %19 : vector<1x256xf32> to vector<16x256xf32>
    %21 = arith.addf %18, %20 : vector<16x256xf32>
    %c0_5 = arith.constant 0 : index
    %c0_6 = arith.constant 0 : index
    %22 = vector.load %arg4[%c0_5, %c0_6] : memref<16x256xf32, #tpu.memory_space<vmem>>, vector<16x256xf32>
    tpu.vector_store %arg4[%c0_5, %c0_6], %21 {strides = array<i32>} : memref<16x256xf32, #tpu.memory_space<vmem>>, vector<16x256xf32>,
    return
  }
  func.func @transform_0(%arg0: i32) -> (i32, i32) {
    %c0_i32 = arith.constant 0 : i32
    %c0_i32_0 = arith.constant 0 : i32
    return %arg0, %c0_i32 : i32, i32
  }
  func.func @transform_1(%arg0: i32) -> (i32, i32) {
    %c0_i32 = arith.constant 0 : i32
    %c0_i32_0 = arith.constant 0 : i32
    %c0_i32_1 = arith.constant 0 : i32
    return %c0_i32, %c0_i32_0 : i32, i32
  }
  func.func @transform_2(%arg0: i32) -> (i32, i32) {
    %c0_i32 = arith.constant 0 : i32
    %c0_i32_0 = arith.constant 0 : i32
    %c0_i32_1 = arith.constant 0 : i32
    return %c0_i32, %c0_i32_0 : i32, i32
  }
  func.func @transform_3(%arg0: i32) -> (i32, i32) {
    %c0_i32 = arith.constant 0 : i32
    %c0_i32_0 = arith.constant 0 : i32
    return %arg0, %c0_i32 : i32, i32
  }
}

</mosaic_0001>

<llo_original>
// kernel: tpu_custom_call.1
$region0: #{tpu_custom_call.1}
  #allocation0 [shape = 'u32[]', space=smem, size = 0x4, offset = 0x4, fixed_abs, tag = 'smem constant byte address 0x4 - core index']
  #allocation1 [shape = 'u32[144,128]{1,0:T(1,128)}', space=vmem, size = 0x12000, scoped, tag = 'internal scratch']
  %s0 = inlined_call_operand.vmem [shape: f32[16,3], index: 0, kind: input, shape index: {}]
  %s1 = inlined_call_operand.vmem [shape: f32[3,256], index: 1, kind: input, shape index: {}]
  %s2 = inlined_call_operand.vmem [shape: f32[1,256], index: 2, kind: input, shape index: {}]
  %s3 = inlined_call_operand.hbm [shape: f32[16,256], index: 3, kind: output, shape index: {}]
  %s4 = sld [smem:[#allocation0]]
  $region22: #{tpu_custom_call.1} parent=0
    _
  %s6 = ssub.s32 1, %s4
  %s7 = scalar_select 0, %s6, %s4
  $region1: #{tpu_custom_call.1} parent=0
    #allocation2 [shape = 'u8[16384]{0}', space=vmem, size = 0x4000, scoped, tag = 'output window, operand 0, single buffered']
    #allocation3 [shape = 's32[1]{0}', space=sflag, size = 0x4, scoped, tag = 'scoped memory for tpu_custom_call.1']
    %8 = vsyncpa [#allocation3], 0
    // Predicated region
    $region2: #{tpu_custom_call.1} parent=1 // pred_check
      _
    $region3: #{tpu_custom_call.1} parent=1 // pred_check_branch
      %10 = sbr.rel (0) target = $region5
    $region4: #{tpu_custom_call.1} parent=1 // pred_region
      _
    $region5: #{tpu_custom_call.1} parent=1 // pred_fallthru
      _
    // Predicated region
    $region6: #{tpu_custom_call.1} parent=1 // pred_check
      _
    $region7: #{tpu_custom_call.1} parent=1 // pred_check_branch
      %12 = sbr.rel (0) target = $region9
    $region8: #{tpu_custom_call.1} parent=1 // pred_region
      _
    $region9: #{tpu_custom_call.1} parent=1 // pred_fallthru
      _
    // Predicated region
    $region10: #{tpu_custom_call.1} parent=1 // pred_check
      _
    $region11: #{tpu_custom_call.1} parent=1 // pred_check_branch
      %14 = sbr.rel (0) target = $region13
    $region12: #{tpu_custom_call.1} parent=1 // pred_region
      _
    $region13: #{tpu_custom_call.1} parent=1 // pred_fallthru
      _
    %v15 = vld [vmem:[%s0] sm:$0xff]
    %v16 = vld [vmem:[%s0 + $0x8] sm:$0xff]
    %v17 = vld [vmem:[%s1] sm:$0x77]
    %19 = vset.pattern.permute.xlu0 0
    %20 = vperm.xlu0 %19, %v15
    %v21 = vpop.permute.xlu0 %20
    %24 = vset.pattern.permute.xlu0 0
    %25 = vperm.xlu0 %24, %v16
    %v26 = vpop.permute.xlu0 %25
    %v29 = vlaneseq
    %v30 = vshrl.u32 %v29, 7
    %v31 = vsub.s32 0, %v30
    %v32 = vrot.slane %v17, %v31
    %v33 = vlaneseq
    %v34 = vshrl.u32 %v33, 7
    %v35 = vsub.s32 4, %v34
    %v36 = vrot.slane %v17, %v35
    %v39 = vlaneseq
    %v40 = vshrl.u32 %v39, 7
    %v41 = vsub.s32 0, %v40
    %v42 = vrot.slane %v32, %v41
    %v43 = vlaneseq
    %v44 = vshrl.u32 %v43, 7
    %v45 = vsub.s32 0, %v44
    %v46 = vrot.slane %v36, %v45
    %v47 = vmul.f32 %v21, %v42
    %v48 = vmul.f32 %v21, %v46
    %v49 = vmul.f32 %v26, %v42
    %v50 = vmul.f32 %v26, %v46
    %51 = vset.pattern.permute.xlu0 1
    %52 = vperm.xlu0 %51, %v15
    %v53 = vpop.permute.xlu0 %52
    %55 = vset.pattern.permute.xlu0 1
    %56 = vperm.xlu0 %55, %v16
    %v57 = vpop.permute.xlu0 %56
    %v59 = vlaneseq
    %v60 = vshrl.u32 %v59, 7
    %v61 = vsub.s32 1, %v60
    %v62 = vrot.slane %v17, %v61
    %v63 = vlaneseq
    %v64 = vshrl.u32 %v63, 7
    %v65 = vsub.s32 5, %v64
    %v66 = vrot.slane %v17, %v65
    %v69 = vlaneseq
    %v70 = vshrl.u32 %v69, 7
    %v71 = vsub.s32 1, %v70
    %v72 = vrot.slane %v62, %v71
    %v73 = vlaneseq
    %v74 = vshrl.u32 %v73, 7
    %v75 = vsub.s32 1, %v74
    %v76 = vrot.slane %v66, %v75
    %v77 = vmul.f32 %v53, %v72
    %v78 = vmul.f32 %v53, %v76
    %v79 = vmul.f32 %v57, %v72
    %v80 = vmul.f32 %v57, %v76
    %v81 = vadd.f32 %v47, %v77
    %v82 = vadd.f32 %v48, %v78
    %v83 = vadd.f32 %v49, %v79
    %v84 = vadd.f32 %v50, %v80
    %85 = vset.pattern.permute.xlu0 2
    %86 = vperm.xlu0 %85, %v15
    %v87 = vpop.permute.xlu0 %86
    %89 = vset.pattern.permute.xlu0 2
    %90 = vperm.xlu0 %89, %v16
    %v91 = vpop.permute.xlu0 %90
    %v93 = vlaneseq
    %v94 = vshrl.u32 %v93, 7
    %v95 = vsub.s32 2, %v94
    %v96 = vrot.slane %v17, %v95
    %v97 = vlaneseq
    %v98 = vshrl.u32 %v97, 7
    %v99 = vsub.s32 6, %v98
    %v100 = vrot.slane %v17, %v99
    %v103 = vlaneseq
    %v104 = vshrl.u32 %v103, 7
    %v105 = vsub.s32 2, %v104
    %v106 = vrot.slane %v96, %v105
    %v107 = vlaneseq
    %v108 = vshrl.u32 %v107, 7
    %v109 = vsub.s32 2, %v108
    %v110 = vrot.slane %v100, %v109
    %v111 = vmul.f32 %v87, %v106
    %v112 = vmul.f32 %v87, %v110
    %v113 = vmul.f32 %v91, %v106
    %v114 = vmul.f32 %v91, %v110
    %v115 = vadd.f32 %v81, %v111
    %v116 = vadd.f32 %v82, %v112
    %v117 = vadd.f32 %v83, %v113
    %v118 = vadd.f32 %v84, %v114
    %v119 = vld [vmem:[%s2] sm:$0x3]
    %v121 = vlaneseq
    %v122 = vshrl.u32 %v121, 7
    %v123 = vsub.s32 0, %v122
    %v124 = vrot.slane %v119, %v123
    %v125 = vlaneseq
    %v126 = vshrl.u32 %v125, 7
    %v127 = vsub.s32 1, %v126
    %v128 = vrot.slane %v119, %v127
    %v131 = vadd.f32 %v115, %v124
    %v132 = vadd.f32 %v116, %v128
    %v133 = vadd.f32 %v117, %v124
    %v134 = vadd.f32 %v118, %v128
    %135 = vst [vmem:[#allocation2] sm:$0xff] %v131
    %136 = vst [vmem:[#allocation2 + $0x8] sm:$0xff] %v132
    %137 = vst [vmem:[#allocation2 + $0x10] sm:$0xff] %v133
    %138 = vst [vmem:[#allocation2 + $0x18] sm:$0xff] %v134
    // Predicated region
    $region14: #{tpu_custom_call.1} parent=1 // pred_check
      _
    $region15: #{tpu_custom_call.1} parent=1 // pred_check_branch
      %140 = sbr.rel (0) target = $region17
    $region16: #{tpu_custom_call.1} parent=1 // pred_region
      %s142 = ssub.s32 512, 512
      %143 = vsyncadd [#allocation3], %s142
      %s144 = sshll.u32 [#allocation2], 4
      %s145 = int_to_ptr.vmem [resolvable:$true] %s144
      %150 = dma.vmem_to_hbm [thread:$0]  %s145, 512, %s3, [#allocation3], 256, 256, 16
    $region17: #{tpu_custom_call.1} parent=1 // pred_fallthru
      _
    // Predicated region
    $region18: #{tpu_custom_call.1} parent=1 // pred_check
      _
    $region19: #{tpu_custom_call.1} parent=1 // pred_check_branch
      %152 = sbr.rel (0) target = $region21
    $region20: #{tpu_custom_call.1} parent=1 // pred_region
      %153 = dma.done [#allocation3], 512
    $region21: #{tpu_custom_call.1} parent=1 // pred_fallthru
      _
    %154 = vsyncpa [#allocation3], 1

</llo_original>
